<compile_context>
chip_gen: v5e
topology: v5e:2x2
jax: 0.10.0
libtpu: 0.0.40
codegen_flags: <defaults>
</compile_context>

<pallas_src>
import functools

import jax
import jax.numpy as jnp
from jax.experimental import pallas as pl
from jax.experimental.pallas import tpu as pltpu

# True layer sizes from the PyTorch module.
H1, H2, H3, OUT = 110, 116, 121, 1
LANE = 128           # hidden feature axes padded to this
SUBLANE = 8          # batch tile must be a multiple of this
DEFAULT_TB = 4096    # requested batch tile (rows); clamped per VMEM / TC split

# Per-generation VMEM envelope, queried once at import. Conservative clamp:
# stays under v7x's 64 MiB-per-TC physical, comfortably raises v5e's 16 MiB
# default scoped limit, and is far below v6e's 128 MiB.
try:
    _VMEM_PHYS = int(pltpu.get_tpu_info().vmem_capacity_bytes)
except Exception:  # pragma: no cover - defensive fallback
    _VMEM_PHYS = 64 << 20
_VMEM_LIMIT = int(min(_VMEM_PHYS // 2, 48 << 20))


def _round_up(n, m):
    return ((n + m - 1) // m) * m


def _pad_to(x, rows, cols):
    r, c = x.shape
    return jnp.pad(x, ((0, rows - r), (0, cols - c)))


def _choose_tb(batch, input_dim, requested):
    """Batch tile size: multiple of 8, fits the VMEM budget, >=2 grid tiles."""
    # Resident bytes per batch row: f32 x double-buffer + f32 out double-buffer
    # + ~3 live (., 128) f32 intermediates inside the kernel body.
    per_row = 2 * input_dim * 4 + 2 * OUT * 4 + 3 * LANE * 4
    # VMEM-resident weights: bf16 matmul weights + f32 biases / w4 row.
    weight_bytes = (input_dim * LANE + 2 * LANE * LANE) * 2 + 5 * LANE * 4
    avail = max(_VMEM_LIMIT * 4 // 5 - weight_bytes, SUBLANE * per_row)
    tb_vmem = max(SUBLANE, (avail // per_row) // SUBLANE * SUBLANE)
    # At least 2 tiles so the "parallel" batch axis can shard across v7x's
    # two TensorCores (harmless no-op on v5e/v6e).
    tb_split = _round_up(pl.cdiv(batch, 2), SUBLANE)
    tb = min(_round_up(requested, SUBLANE), tb_vmem, tb_split)
    return max(tb, SUBLANE)


def mlp_kernel(x_ref,
               w1_ref, b1_ref,
               w2_ref, b2_ref,
               w3_ref, b3_ref,
               w4_ref, b4_ref,
               o_ref):
    # Layer 1: Linear + ReLU   (TB, D)bf16 @ (D, 128)bf16 -> f32 acc
    h = jnp.dot(x_ref[...].astype(jnp.bfloat16), w1_ref[...],
                preferred_element_type=jnp.float32)
    h = jnp.maximum(h + b1_ref[...], 0.0)
    # Layer 2: Linear + ReLU   (TB, 128) @ (128, 128)
    h = jnp.dot(h.astype(jnp.bfloat16), w2_ref[...],
                preferred_element_type=jnp.float32)
    h = jnp.maximum(h + b2_ref[...], 0.0)
    # Layer 3: Linear + ReLU   (TB, 128) @ (128, 128)
    h = jnp.dot(h.astype(jnp.bfloat16), w3_ref[...],
                preferred_element_type=jnp.float32)
    h = jnp.maximum(h + b3_ref[...], 0.0)
    # Layer 4: out width 1 -> f32 VPU multiply + lane reduction (no MXU pass).
    o_ref[...] = (jnp.sum(h * w4_ref[...], axis=-1, keepdims=True)
                  + b4_ref[...])


def prepare_params(params, input_dim):
    """One-time parameter prep: pad hidden axes to 128 lanes, cast matmul
    weights to bf16, transpose w4 into a (1, 128) row. Padding is exact:
    padded weight rows/cols are zero, ReLU(0)=0, and the final reduction only
    touches real lanes via the zero-padded w4 row."""
    (w1, b1), (w2, b2), (w3, b3), (w4, b4) = params
    w1p = _pad_to(w1.astype(jnp.float32), input_dim, LANE).astype(jnp.bfloat16)
    w2p = _pad_to(w2.astype(jnp.float32), LANE, LANE).astype(jnp.bfloat16)
    w3p = _pad_to(w3.astype(jnp.float32), LANE, LANE).astype(jnp.bfloat16)
    w4p = _pad_to(w4.astype(jnp.float32).reshape(H3, OUT).T, 1, LANE)  # f32
    b1p = _pad_to(b1.astype(jnp.float32).reshape(1, -1), 1, LANE)
    b2p = _pad_to(b2.astype(jnp.float32).reshape(1, -1), 1, LANE)
    b3p = _pad_to(b3.astype(jnp.float32).reshape(1, -1), 1, LANE)
    b4p = b4.astype(jnp.float32).reshape(1, 1)
    return (w1p, b1p, w2p, b2p, w3p, b3p, w4p, b4p)


@functools.partial(jax.jit, static_argnames=("input_dim", "tb"))
def mlp_forward(x, prepared, *, input_dim, tb=DEFAULT_TB):
    """x: [B, input_dim] -> [B, 1] float32. `prepared` from prepare_params."""
    w1p, b1p, w2p, b2p, w3p, b3p, w4p, b4p = prepared

    B = x.shape[0]
    TB = _choose_tb(B, input_dim, tb)
    num_tiles = pl.cdiv(B, TB)   # ragged grid: Pallas masks the last block

    # Weights / biases: constant index_map -> DMA'd once, stay VMEM-resident.
    const = lambda shape: pl.BlockSpec(shape, lambda i: (0,) * len(shape))

    weight_bytes = ((w1p.size + w2p.size + w3p.size) * 2
                    + (b1p.size + b2p.size + b3p.size + w4p.size + b4p.size) * 4)
    cost = pl.CostEstimate(
        flops=2 * B * (input_dim * LANE + 2 * LANE * LANE + LANE),
        transcendentals=0,
        bytes_accessed=B * (input_dim * 4 + OUT * 4) + weight_bytes,
    )

    out = pl.pallas_call(
        mlp_kernel,
        out_shape=jax.ShapeDtypeStruct((B, OUT), jnp.float32),
        grid=(num_tiles,),
        in_specs=[
            pl.BlockSpec((TB, input_dim), lambda i: (i, 0)),   # x tile
            const((input_dim, LANE)), const((1, LANE)),        # w1, b1
            const((LANE, LANE)), const((1, LANE)),             # w2, b2
            const((LANE, LANE)), const((1, LANE)),             # w3, b3
            const((1, LANE)), const((1, 1)),                   # w4 row, b4
        ],
        out_specs=pl.BlockSpec((TB, OUT), lambda i: (i, 0)),
        compiler_params=pltpu.CompilerParams(
            dimension_semantics=("parallel",),
            vmem_limit_bytes=_VMEM_LIMIT),
        cost_estimate=cost,
    )(x.astype(jnp.float32), w1p, b1p, w2p, b2p, w3p, b3p, w4p, b4p)

    return out


def init_params(key, input_dim):
    """Deterministic init matching PyTorch nn.Linear default
    (U(-1/sqrt(in_features), 1/sqrt(in_features))).

    Weights stored as (in_features, out_features) so the kernel does x @ W."""
    dims = [(input_dim, H1), (H1, H2), (H2, H3), (H3, OUT)]
    params = []
    for (fin, fout) in dims:
        key, kw, kb = jax.random.split(key, 3)
        bound = 1.0 / jnp.sqrt(float(fin))
        w = jax.random.uniform(kw, (fin, fout), jnp.float32, -bound, bound)
        b = jax.random.uniform(kb, (fout,), jnp.float32, -bound, bound)
        params.append((w, b))
    return params


def reference_forward(x, params):
    (w1, b1), (w2, b2), (w3, b3), (w4, b4) = params
    h = jnp.maximum(x @ w1 + b1, 0.0)
    h = jnp.maximum(h @ w2 + b2, 0.0)
    h = jnp.maximum(h @ w3 + b3, 0.0)
    return h @ w4 + b4


if __name__ == "__main__":
    key = jax.random.PRNGKey(0)
    input_dim = 16
    batch = 2

    kx, kp = jax.random.split(key)
    x = jax.random.normal(kx, (batch, input_dim), jnp.float32)
    params = init_params(kp, input_dim)
    prepared = prepare_params(params, input_dim)   # one-time padding / bf16 cast

    y = mlp_forward(x, prepared, input_dim=input_dim)
    y = jax.block_until_ready(y)

    y_ref = reference_forward(x, params)
    assert y.shape == (batch, OUT), y.shape
    # bf16 matmul operands with f32 accumulation: relaxed tolerance vs f32 ref.
    assert jnp.allclose(y, y_ref, atol=3e-2, rtol=3e-2), (y, y_ref)

    # Also exercise a multi-tile, ragged batch (not a multiple of the tile).
    batch2 = 1037
    x2 = jax.random.normal(kx, (batch2, input_dim), jnp.float32)
    y2 = jax.block_until_ready(mlp_forward(x2, prepared, input_dim=input_dim))
    y2_ref = reference_forward(x2, params)
    assert y2.shape == (batch2, OUT), y2.shape
    assert jnp.allclose(y2, y2_ref, atol=3e-2, rtol=3e-2)

    print("KERNEL_OK")
</pallas_src>

<mosaic_0001>
module attributes {stable_mosaic.version = 11 : i64} {
  func.func @mlp_kernel(%arg0: i32, %arg1: memref<8x16xf32, #tpu.memory_space<vmem>>, %arg2: memref<16x128xbf16, #tpu.memory_space<vmem>>, %arg3: memref<1x128xf32, #tpu.memory_space<vmem>>, %arg4: memref<128x128xbf16, #tpu.memory_space<vmem>>, %arg5: memref<1x128xf32, #tpu.memory_space<vmem>>, %arg6: memref<128x128xbf16, #tpu.memory_space<vmem>>, %arg7: memref<1x128xf32, #tpu.memory_space<vmem>>, %arg8: memref<1x128xf32, #tpu.memory_space<vmem>>, %arg9: memref<1x1xf32, #tpu.memory_space<vmem>>, %arg10: memref<8x1xf32, #tpu.memory_space<vmem>>) attributes {dimension_semantics = [#tpu.dimension_semantics<parallel>], iteration_bounds = array<i64: 1>, scalar_prefetch = 0 : i64, scratch_operands = 0 : i64, tpu.core_type = #tpu.core_type<tc>, window_params = [{transform_indices = @transform_0, window_bounds = array<i64: 8, 16>}, {pipeline_mode = #tpu.pipeline_mode<synchronous>, transform_indices = @transform_1, window_bounds = array<i64: 16, 128>}, {pipeline_mode = #tpu.pipeline_mode<synchronous>, transform_indices = @transform_2, window_bounds = array<i64: 1, 128>}, {pipeline_mode = #tpu.pipeline_mode<synchronous>, transform_indices = @transform_3, window_bounds = array<i64: 128, 128>}, {pipeline_mode = #tpu.pipeline_mode<synchronous>, transform_indices = @transform_4, window_bounds = array<i64: 1, 128>}, {pipeline_mode = #tpu.pipeline_mode<synchronous>, transform_indices = @transform_5, window_bounds = array<i64: 128, 128>}, {pipeline_mode = #tpu.pipeline_mode<synchronous>, transform_indices = @transform_6, window_bounds = array<i64: 1, 128>}, {pipeline_mode = #tpu.pipeline_mode<synchronous>, transform_indices = @transform_7, window_bounds = array<i64: 1, 128>}, {pipeline_mode = #tpu.pipeline_mode<synchronous>, transform_indices = @transform_8, window_bounds = array<i64: 1, 1>}, {transform_indices = @transform_9, window_bounds = array<i64: 8, 1>}]} {
    %c0 = arith.constant 0 : index
    %c0_0 = arith.constant 0 : index
    %0 = vector.load %arg1[%c0, %c0_0] : memref<8x16xf32, #tpu.memory_space<vmem>>, vector<8x16xf32>
    %1 = arith.truncf %0 : vector<8x16xf32> to vector<8x16xbf16>
    %c0_1 = arith.constant 0 : index
    %c0_2 = arith.constant 0 : index
    %2 = vector.load %arg2[%c0_1, %c0_2] : memref<16x128xbf16, #tpu.memory_space<vmem>>, vector<16x128xbf16>
    %cst = arith.constant dense<0.000000e+00> : vector<8x128xf32>
    %3 = tpu.matmul %1, %2, %cst {dimension_numbers = #tpu.dot_dimension_numbers<[1], [0], [0], [1], [0, 0, 1, 1], [], []>} : vector<8x16xbf16>, vector<16x128xbf16>, vector<8x128xf32> -> vector<8x128xf32>
    %c0_3 = arith.constant 0 : index
    %c0_4 = arith.constant 0 : index
    %4 = vector.load %arg3[%c0_3, %c0_4] : memref<1x128xf32, #tpu.memory_space<vmem>>, vector<1x128xf32>
    %5 = vector.broadcast %4 : vector<1x128xf32> to vector<8x128xf32>
    %6 = arith.addf %3, %5 : vector<8x128xf32>
    %cst_5 = arith.constant 0.000000e+00 : f32
    %7 = vector.broadcast %cst_5 : f32 to vector<8x128xf32>
    %8 = arith.maximumf %6, %7 : vector<8x128xf32>
    %9 = arith.truncf %8 : vector<8x128xf32> to vector<8x128xbf16>
    %c0_6 = arith.constant 0 : index
    %c0_7 = arith.constant 0 : index
    %10 = vector.load %arg4[%c0_6, %c0_7] : memref<128x128xbf16, #tpu.memory_space<vmem>>, vector<128x128xbf16>
    %cst_8 = arith.constant dense<0.000000e+00> : vector<8x128xf32>
    %11 = tpu.matmul %9, %10, %cst_8 {dimension_numbers = #tpu.dot_dimension_numbers<[1], [0], [0], [1], [0, 0, 1, 1], [], []>} : vector<8x128xbf16>, vector<128x128xbf16>, vector<8x128xf32> -> vector<8x128xf32>
    %c0_9 = arith.constant 0 : index
    %c0_10 = arith.constant 0 : index
    %12 = vector.load %arg5[%c0_9, %c0_10] : memref<1x128xf32, #tpu.memory_space<vmem>>, vector<1x128xf32>
    %13 = vector.broadcast %12 : vector<1x128xf32> to vector<8x128xf32>
    %14 = arith.addf %11, %13 : vector<8x128xf32>
    %cst_11 = arith.constant 0.000000e+00 : f32
    %15 = vector.broadcast %cst_11 : f32 to vector<8x128xf32>
    %16 = arith.maximumf %14, %15 : vector<8x128xf32>
    %17 = arith.truncf %16 : vector<8x128xf32> to vector<8x128xbf16>
    %c0_12 = arith.constant 0 : index
    %c0_13 = arith.constant 0 : index
    %18 = vector.load %arg6[%c0_12, %c0_13] : memref<128x128xbf16, #tpu.memory_space<vmem>>, vector<128x128xbf16>
    %cst_14 = arith.constant dense<0.000000e+00> : vector<8x128xf32>
    %19 = tpu.matmul %17, %18, %cst_14 {dimension_numbers = #tpu.dot_dimension_numbers<[1], [0], [0], [1], [0, 0, 1, 1], [], []>} : vector<8x128xbf16>, vector<128x128xbf16>, vector<8x128xf32> -> vector<8x128xf32>
    %c0_15 = arith.constant 0 : index
    %c0_16 = arith.constant 0 : index
    %20 = vector.load %arg7[%c0_15, %c0_16] : memref<1x128xf32, #tpu.memory_space<vmem>>, vector<1x128xf32>
    %21 = vector.broadcast %20 : vector<1x128xf32> to vector<8x128xf32>
    %22 = arith.addf %19, %21 : vector<8x128xf32>
    %cst_17 = arith.constant 0.000000e+00 : f32
    %23 = vector.broadcast %cst_17 : f32 to vector<8x128xf32>
    %24 = arith.maximumf %22, %23 : vector<8x128xf32>
    %c0_18 = arith.constant 0 : index
    %c0_19 = arith.constant 0 : index
    %25 = vector.load %arg8[%c0_18, %c0_19] : memref<1x128xf32, #tpu.memory_space<vmem>>, vector<1x128xf32>
    %26 = vector.broadcast %25 : vector<1x128xf32> to vector<8x128xf32>
    %27 = arith.mulf %24, %26 : vector<8x128xf32>
    %cst_20 = arith.constant dense<0.000000e+00> : vector<8xf32>
    %28 = vector.multi_reduction <add>, %27, %cst_20 [1] : vector<8x128xf32> to vector<8xf32>
    %29 = vector.shape_cast %28 : vector<8xf32> to vector<8x1xf32>
    %c0_21 = arith.constant 0 : index
    %c0_22 = arith.constant 0 : index
    %30 = vector.load %arg9[%c0_21, %c0_22] : memref<1x1xf32, #tpu.memory_space<vmem>>, vector<1x1xf32>
    %31 = vector.broadcast %30 : vector<1x1xf32> to vector<8x1xf32>
    %32 = arith.addf %29, %31 : vector<8x1xf32>
    %c0_23 = arith.constant 0 : index
    %c0_24 = arith.constant 0 : index
    %33 = vector.load %arg10[%c0_23, %c0_24] : memref<8x1xf32, #tpu.memory_space<vmem>>, vector<8x1xf32>
    tpu.vector_store %arg10[%c0_23, %c0_24], %32 {strides = array<i32>} : memref<8x1xf32, #tpu.memory_space<vmem>>, vector<8x1xf32>,
    return
  }
  func.func @transform_0(%arg0: i32) -> (i32, i32) {
    %c0_i32 = arith.constant 0 : i32
    %c0_i32_0 = arith.constant 0 : i32
    return %arg0, %c0_i32 : i32, i32
  }
  func.func @transform_1(%arg0: i32) -> (i32, i32) {
    %c0_i32 = arith.constant 0 : i32
    %c0_i32_0 = arith.constant 0 : i32
    %c0_i32_1 = arith.constant 0 : i32
    return %c0_i32, %c0_i32_0 : i32, i32
  }
  func.func @transform_2(%arg0: i32) -> (i32, i32) {
    %c0_i32 = arith.constant 0 : i32
    %c0_i32_0 = arith.constant 0 : i32
    %c0_i32_1 = arith.constant 0 : i32
    return %c0_i32, %c0_i32_0 : i32, i32
  }
  func.func @transform_3(%arg0: i32) -> (i32, i32) {
    %c0_i32 = arith.constant 0 : i32
    %c0_i32_0 = arith.constant 0 : i32
    %c0_i32_1 = arith.constant 0 : i32
    return %c0_i32, %c0_i32_0 : i32, i32
  }
  func.func @transform_4(%arg0: i32) -> (i32, i32) {
    %c0_i32 = arith.constant 0 : i32
    %c0_i32_0 = arith.constant 0 : i32
    %c0_i32_1 = arith.constant 0 : i32
    return %c0_i32, %c0_i32_0 : i32, i32
  }
  func.func @transform_5(%arg0: i32) -> (i32, i32) {
    %c0_i32 = arith.constant 0 : i32
    %c0_i32_0 = arith.constant 0 : i32
    %c0_i32_1 = arith.constant 0 : i32
    return %c0_i32, %c0_i32_0 : i32, i32
  }
  func.func @transform_6(%arg0: i32) -> (i32, i32) {
    %c0_i32 = arith.constant 0 : i32
    %c0_i32_0 = arith.constant 0 : i32
    %c0_i32_1 = arith.constant 0 : i32
    return %c0_i32, %c0_i32_0 : i32, i32
  }
  func.func @transform_7(%arg0: i32) -> (i32, i32) {
    %c0_i32 = arith.constant 0 : i32
    %c0_i32_0 = arith.constant 0 : i32
    %c0_i32_1 = arith.constant 0 : i32
    return %c0_i32, %c0_i32_0 : i32, i32
  }
  func.func @transform_8(%arg0: i32) -> (i32, i32) {
    %c0_i32 = arith.constant 0 : i32
    %c0_i32_0 = arith.constant 0 : i32
    %c0_i32_1 = arith.constant 0 : i32
    return %c0_i32, %c0_i32_0 : i32, i32
  }
  func.func @transform_9(%arg0: i32) -> (i32, i32) {
    %c0_i32 = arith.constant 0 : i32
    %c0_i32_0 = arith.constant 0 : i32
    return %arg0, %c0_i32 : i32, i32
  }
}

</mosaic_0001>

<llo_original>
// kernel: mlp_forward.1
$region0: #{mlp_forward.1}
  #allocation0 [shape = 'u32[]', space=smem, size = 0x4, offset = 0x4, fixed_abs, tag = 'smem constant byte address 0x4 - core index']
  #allocation1 [shape = 'u32[72,128]{1,0:T(1,128)}', space=vmem, size = 0x9000, scoped, tag = 'internal scratch']
  #allocation2 [shape = 'f32[1,1]{1,0:T(1,128)S(1)}', space=vmem, size = 0x200, scoped, tag = 'scoped memory for mlp_forward.1']
  %s0 = inlined_call_operand.vmem [shape: f32[2,16], index: 0, kind: input, shape index: {}]
  %s1 = inlined_call_operand.hbm [shape: bf16[16,128], index: 1, kind: input, shape index: {}]
  %s2 = inlined_call_operand.vmem [shape: f32[1,128], index: 2, kind: input, shape index: {}]
  %s3 = inlined_call_operand.hbm [shape: bf16[128,128], index: 3, kind: input, shape index: {}]
  %s4 = inlined_call_operand.vmem [shape: f32[1,128], index: 4, kind: input, shape index: {}]
  %s5 = inlined_call_operand.hbm [shape: bf16[128,128], index: 5, kind: input, shape index: {}]
  %s6 = inlined_call_operand.vmem [shape: f32[1,128], index: 6, kind: input, shape index: {}]
  %s7 = inlined_call_operand.vmem [shape: f32[1,128], index: 7, kind: input, shape index: {}]
  %s8 = inlined_call_operand.<no memory space> [shape: f32[1,1], index: 8, kind: input, shape index: {}]
  %s9 = inlined_call_operand.vmem [shape: f32[2,1], index: 9, kind: output, shape index: {}]
  %s10 = sld [smem:[#allocation0]]
  $region88: #{mlp_forward.1} parent=0
    _
  %s12 = ssub.s32 1, %s10
  %s13 = scalar_select 0, %s12, %s10
  %v14 = vstv %s8
  %15 = vst [vmem:[#allocation2] sm:$0x1] %v14
  $region1: #{mlp_forward.1} parent=0
    #allocation3 [shape = 'u8[4096]{0}', space=vmem, size = 0x1000, scoped, tag = 'input window, operand 1, single buffered']
    #allocation4 [shape = 's32[1]{0}', space=sflag, size = 0x4, scoped, tag = 'scoped memory for mlp_forward.1']
    #allocation5 [shape = 'u8[32768]{0}', space=vmem, size = 0x8000, scoped, tag = 'input window, operand 3, single buffered']
    #allocation6 [shape = 's32[1]{0}', space=sflag, size = 0x4, scoped, tag = 'scoped memory for mlp_forward.1']
    #allocation7 [shape = 'u8[32768]{0}', space=vmem, size = 0x8000, scoped, tag = 'input window, operand 5, single buffered']
    #allocation8 [shape = 'u8[4096]{0}', space=vmem, size = 0x1000, scoped, tag = 'output window, operand 0, single buffered']
    %16 = vsyncpa [#allocation4], 0
    %17 = vsyncpa [#allocation6], 0
    // Predicated region
    $region2: #{mlp_forward.1} parent=1 // pred_check
      _
    $region3: #{mlp_forward.1} parent=1 // pred_check_branch
      %19 = sbr.rel (0) target = $region5
    $region4: #{mlp_forward.1} parent=1 // pred_region
      _
    $region5: #{mlp_forward.1} parent=1 // pred_fallthru
      _
    // Predicated region
    $region6: #{mlp_forward.1} parent=1 // pred_check
      _
    $region7: #{mlp_forward.1} parent=1 // pred_check_branch
      %21 = sbr.rel (0) target = $region9
    $region8: #{mlp_forward.1} parent=1 // pred_region
      %23 = vsyncadd [#allocation4], 0
      %s24 = sshll.u32 %s1, 4
      %s25 = int_to_ptr.hbm [resolvable:$true] %s24
      %s26 = sshll.u32 [#allocation3], 4
      %s27 = int_to_ptr.vmem [resolvable:$true] %s26
      %32 = dma.hbm_to_vmem [thread:$0]  %s25, 128, %s27, [#allocation4], 64, 64, 4
    $region9: #{mlp_forward.1} parent=1 // pred_fallthru
      _
    // Predicated region
    $region10: #{mlp_forward.1} parent=1 // pred_check
      _
    $region11: #{mlp_forward.1} parent=1 // pred_check_branch
      %34 = sbr.rel (0) target = $region13
    $region12: #{mlp_forward.1} parent=1 // pred_region
      _
    $region13: #{mlp_forward.1} parent=1 // pred_fallthru
      _
    // Predicated region
    $region14: #{mlp_forward.1} parent=1 // pred_check
      _
    $region15: #{mlp_forward.1} parent=1 // pred_check_branch
      %36 = sbr.rel (0) target = $region17
    $region16: #{mlp_forward.1} parent=1 // pred_region
      %38 = vsyncadd [#allocation6], 0
      %s39 = sshll.u32 %s3, 4
      %s40 = int_to_ptr.hbm [resolvable:$true] %s39
      %s41 = sshll.u32 [#allocation5], 4
      %s42 = int_to_ptr.vmem [resolvable:$true] %s41
      %47 = dma.hbm_to_vmem [thread:$0]  %s40, 1024, %s42, [#allocation6], 64, 64, 4
    $region17: #{mlp_forward.1} parent=1 // pred_fallthru
      _
    // Predicated region
    $region18: #{mlp_forward.1} parent=1 // pred_check
      _
    $region19: #{mlp_forward.1} parent=1 // pred_check_branch
      %49 = sbr.rel (0) target = $region21
    $region20: #{mlp_forward.1} parent=1 // pred_region
      _
    $region21: #{mlp_forward.1} parent=1 // pred_fallthru
      _
    // Predicated region
    $region22: #{mlp_forward.1} parent=1 // pred_check
      _
    $region23: #{mlp_forward.1} parent=1 // pred_check_branch
      %51 = sbr.rel (0) target = $region25
    $region24: #{mlp_forward.1} parent=1 // pred_region
      %53 = vsyncadd [#allocation6], 0
      %s54 = sshll.u32 %s5, 4
      %s55 = int_to_ptr.hbm [resolvable:$true] %s54
      %s56 = sshll.u32 [#allocation7], 4
      %s57 = int_to_ptr.vmem [resolvable:$true] %s56
      %62 = dma.hbm_to_vmem [thread:$0]  %s55, 1024, %s57, [#allocation6], 64, 64, 4
    $region25: #{mlp_forward.1} parent=1 // pred_fallthru
      _
    // Predicated region
    $region26: #{mlp_forward.1} parent=1 // pred_check
      _
    $region27: #{mlp_forward.1} parent=1 // pred_check_branch
      %64 = sbr.rel (0) target = $region29
    $region28: #{mlp_forward.1} parent=1 // pred_region
      _
    $region29: #{mlp_forward.1} parent=1 // pred_fallthru
      _
    // Predicated region
    $region30: #{mlp_forward.1} parent=1 // pred_check
      _
    $region31: #{mlp_forward.1} parent=1 // pred_check_branch
      %66 = sbr.rel (0) target = $region33
    $region32: #{mlp_forward.1} parent=1 // pred_region
      _
    $region33: #{mlp_forward.1} parent=1 // pred_fallthru
      _
    // Predicated region
    $region34: #{mlp_forward.1} parent=1 // pred_check
      _
    $region35: #{mlp_forward.1} parent=1 // pred_check_branch
      %68 = sbr.rel (0) target = $region37
    $region36: #{mlp_forward.1} parent=1 // pred_region
      _
    $region37: #{mlp_forward.1} parent=1 // pred_fallthru
      _
    // Predicated region
    $region38: #{mlp_forward.1} parent=1 // pred_check
      _
    $region39: #{mlp_forward.1} parent=1 // pred_check_branch
      %70 = sbr.rel (0) target = $region41
    $region40: #{mlp_forward.1} parent=1 // pred_region
      %72 = dma.done [#allocation4], 128
    $region41: #{mlp_forward.1} parent=1 // pred_fallthru
      _
    // Predicated region
    $region42: #{mlp_forward.1} parent=1 // pred_check
      _
    $region43: #{mlp_forward.1} parent=1 // pred_check_branch
      %74 = sbr.rel (0) target = $region45
    $region44: #{mlp_forward.1} parent=1 // pred_region
      %76 = dma.done [#allocation6], 1024
    $region45: #{mlp_forward.1} parent=1 // pred_fallthru
      _
    // Predicated region
    $region46: #{mlp_forward.1} parent=1 // pred_check
      _
    $region47: #{mlp_forward.1} parent=1 // pred_check_branch
      %78 = sbr.rel (0) target = $region49
    $region48: #{mlp_forward.1} parent=1 // pred_region
      %80 = dma.done [#allocation6], 1024
    $region49: #{mlp_forward.1} parent=1 // pred_fallthru
      _
    %v82 = vld [vmem:[%s0] sm:$0xff]
    %v83 = vpack.c.bf16 %v82, %v82
    %v84 = vld [vmem:[#allocation3] sm:$0xf]
    %v85 = vld [vmem:[#allocation3 + $0x4] sm:$0xf]
    %v86 = vld [vmem:[%s2] sm:$0x1]
    %v88 = vperm.slane %v86, 0
    %v92 = vunpack.c.l.b16 %v84
    %v93 = vunpack.c.l.b16 %v85
    %v94 = vpack.c.b16 %v93, %v92
    %vm96 = vcmask 130048
    %v98 = vsel %vm96, %v83, 0
    %100 = vmatpush.bf16.msra.mxu0 0
    %101 = vmatpush.bf16.msra.mxu0 0
    %102 = vmatpush.bf16.msra.mxu0 0
    %103 = vmatpush.bf16.msra.mxu0 0
    %104 = vmatpush.bf16.msra.mxu0 0
    %105 = vmatpush.bf16.msra.mxu0 0
    %106 = vmatpush.bf16.msra.mxu0 0
    %107 = vmatpush.bf16.msra.mxu0 %v94
    %108 = vmatmul.bf16.gmra.mxu0 %v98
    %v109 = vpop.f32.mrf.mxu0
    %v110 = vadd.f32 %v88, %v109
    %v111 = vpop.f32.mrf.mxu0
    %112 = vdwg.mxu0
    %v113 = vmax.f32 %v110, 0.0
    %v114 = vpack.c.bf16 %v113, %v113
    %v115 = vld [vmem:[#allocation5] sm:$0xf]
    %v116 = vld [vmem:[#allocation5 + $0x4] sm:$0xf]
    %v117 = vld [vmem:[#allocation5 + $0x8] sm:$0xf]
    %v118 = vld [vmem:[#allocation5 + $0xc] sm:$0xf]
    %v119 = vld [vmem:[#allocation5 + $0x10] sm:$0xf]
    %v120 = vld [vmem:[#allocation5 + $0x14] sm:$0xf]
    %v121 = vld [vmem:[#allocation5 + $0x18] sm:$0xf]
    %v122 = vld [vmem:[#allocation5 + $0x1c] sm:$0xf]
    %v123 = vld [vmem:[#allocation5 + $0x20] sm:$0xf]
    %v124 = vld [vmem:[#allocation5 + $0x24] sm:$0xf]
    %v125 = vld [vmem:[#allocation5 + $0x28] sm:$0xf]
    %v126 = vld [vmem:[#allocation5 + $0x2c] sm:$0xf]
    %v127 = vld [vmem:[#allocation5 + $0x30] sm:$0xf]
    %v128 = vld [vmem:[#allocation5 + $0x34] sm:$0xf]
    %v129 = vld [vmem:[#allocation5 + $0x38] sm:$0xf]
    %v130 = vld [vmem:[#allocation5 + $0x3c] sm:$0xf]
    %v131 = vld [vmem:[%s4] sm:$0x1]
    %v133 = vperm.slane %v131, 0
    %v151 = vunpack.c.l.b16 %v115
    %v152 = vunpack.c.l.b16 %v116
    %v153 = vunpack.c.l.b16 %v117
    %v154 = vunpack.c.l.b16 %v118
    %v155 = vunpack.c.l.b16 %v119
    %v156 = vunpack.c.l.b16 %v120
    %v157 = vunpack.c.l.b16 %v121
    %v158 = vunpack.c.l.b16 %v122
    %v159 = vunpack.c.l.b16 %v123
    %v160 = vunpack.c.l.b16 %v124
    %v161 = vunpack.c.l.b16 %v125
    %v162 = vunpack.c.l.b16 %v126
    %v163 = vunpack.c.l.b16 %v127
    %v164 = vunpack.c.l.b16 %v128
    %v165 = vunpack.c.l.b16 %v129
    %v166 = vunpack.c.l.b16 %v130
    %v167 = vpack.c.b16 %v152, %v151
    %v168 = vpack.c.b16 %v154, %v153
    %v169 = vpack.c.b16 %v156, %v155
    %v170 = vpack.c.b16 %v158, %v157
    %v171 = vpack.c.b16 %v160, %v159
    %v172 = vpack.c.b16 %v162, %v161
    %v173 = vpack.c.b16 %v164, %v163
    %v174 = vpack.c.b16 %v166, %v165
    %183 = vmatpush.bf16.msra.mxu0 %v174
    %184 = vmatpush.bf16.msra.mxu0 %v173
    %185 = vmatpush.bf16.msra.mxu0 %v172
    %186 = vmatpush.bf16.msra.mxu0 %v171
    %187 = vmatpush.bf16.msra.mxu0 %v170
    %188 = vmatpush.bf16.msra.mxu0 %v169
    %189 = vmatpush.bf16.msra.mxu0 %v168
    %190 = vmatpush.bf16.msra.mxu0 %v167
    %191 = vmatmul.bf16.gmra.mxu0 %v114
    %v192 = vpop.f32.mrf.mxu0
    %v193 = vadd.f32 %v133, %v192
    %v194 = vpop.f32.mrf.mxu0
    %195 = vdwg.mxu0
    %v196 = vmax.f32 %v193, 0.0
    %v197 = vpack.c.bf16 %v196, %v196
    %v198 = vld [vmem:[#allocation7] sm:$0xf]
    %v199 = vld [vmem:[#allocation7 + $0x4] sm:$0xf]
    %v200 = vld [vmem:[#allocation7 + $0x8] sm:$0xf]
    %v201 = vld [vmem:[#allocation7 + $0xc] sm:$0xf]
    %v202 = vld [vmem:[#allocation7 + $0x10] sm:$0xf]
    %v203 = vld [vmem:[#allocation7 + $0x14] sm:$0xf]
    %v204 = vld [vmem:[#allocation7 + $0x18] sm:$0xf]
    %v205 = vld [vmem:[#allocation7 + $0x1c] sm:$0xf]
    %v206 = vld [vmem:[#allocation7 + $0x20] sm:$0xf]
    %v207 = vld [vmem:[#allocation7 + $0x24] sm:$0xf]
    %v208 = vld [vmem:[#allocation7 + $0x28] sm:$0xf]
    %v209 = vld [vmem:[#allocation7 + $0x2c] sm:$0xf]
    %v210 = vld [vmem:[#allocation7 + $0x30] sm:$0xf]
    %v211 = vld [vmem:[#allocation7 + $0x34] sm:$0xf]
    %v212 = vld [vmem:[#allocation7 + $0x38] sm:$0xf]
    %v213 = vld [vmem:[#allocation7 + $0x3c] sm:$0xf]
    %v214 = vld [vmem:[%s6] sm:$0x1]
    %v216 = vperm.slane %v214, 0
    %v234 = vunpack.c.l.b16 %v198
    %v235 = vunpack.c.l.b16 %v199
    %v236 = vunpack.c.l.b16 %v200
    %v237 = vunpack.c.l.b16 %v201
    %v238 = vunpack.c.l.b16 %v202
    %v239 = vunpack.c.l.b16 %v203
    %v240 = vunpack.c.l.b16 %v204
    %v241 = vunpack.c.l.b16 %v205
    %v242 = vunpack.c.l.b16 %v206
    %v243 = vunpack.c.l.b16 %v207
    %v244 = vunpack.c.l.b16 %v208
    %v245 = vunpack.c.l.b16 %v209
    %v246 = vunpack.c.l.b16 %v210
    %v247 = vunpack.c.l.b16 %v211
    %v248 = vunpack.c.l.b16 %v212
    %v249 = vunpack.c.l.b16 %v213
    %v250 = vpack.c.b16 %v235, %v234
    %v251 = vpack.c.b16 %v237, %v236
    %v252 = vpack.c.b16 %v239, %v238
    %v253 = vpack.c.b16 %v241, %v240
    %v254 = vpack.c.b16 %v243, %v242
    %v255 = vpack.c.b16 %v245, %v244
    %v256 = vpack.c.b16 %v247, %v246
    %v257 = vpack.c.b16 %v249, %v248
    %266 = vmatpush.bf16.msra.mxu0 %v257
    %267 = vmatpush.bf16.msra.mxu0 %v256
    %268 = vmatpush.bf16.msra.mxu0 %v255
    %269 = vmatpush.bf16.msra.mxu0 %v254
    %270 = vmatpush.bf16.msra.mxu0 %v253
    %271 = vmatpush.bf16.msra.mxu0 %v252
    %272 = vmatpush.bf16.msra.mxu0 %v251
    %273 = vmatpush.bf16.msra.mxu0 %v250
    %274 = vmatmul.bf16.gmra.mxu0 %v197
    %v275 = vpop.f32.mrf.mxu0
    %v276 = vadd.f32 %v216, %v275
    %v277 = vpop.f32.mrf.mxu0
    %278 = vdwg.mxu0
    %v279 = vmax.f32 %v276, 0.0
    %v280 = vld [vmem:[%s7] sm:$0x1]
    %v282 = vperm.slane %v280, 0
    %v284 = vmul.f32 %v279, %v282
    %285 = vadd.xlane.f32.xlu0 %v284
    %v286 = vpop.xlane.xlu0 %285
    %v287 = vld [vmem:[#allocation2] sm:$0x1]
    %v289 = vperm.slane %v287, 0
    %v291 = vadd.f32 %v286, %v289
    %vm292 = vcmask 7168
    %293 = vst.msk [vmem:[#allocation8] sm:$0xff] %vm292, %v291
    // Predicated region
    $region50: #{mlp_forward.1} parent=1 // pred_check
      _
    $region51: #{mlp_forward.1} parent=1 // pred_check_branch
      %295 = sbr.rel (0) target = $region53
    $region52: #{mlp_forward.1} parent=1 // pred_region
      // Predicated region
      $region54: #{mlp_forward.1} parent=52 // pred_check
        _
      $region55: #{mlp_forward.1} parent=52 // pred_check_branch
        %297 = sbr.rel (0) target = $region57
      $region56: #{mlp_forward.1} parent=52 // pred_region
        // Predicated region
        $region58: #{mlp_forward.1} parent=56 // pred_check
          _
        $region59: #{mlp_forward.1} parent=56 // pred_check_branch
          %299 = sbr.rel target = $region61
        $region60: #{mlp_forward.1} parent=56 // pred_region
          // Predicated region
          $region73: #{mlp_forward.1} parent=60 // pred_check
            _
          $region74: #{mlp_forward.1} parent=60 // pred_check_branch
            %315 = sbr.rel (0) target = $region76
          $region75: #{mlp_forward.1} parent=60 // pred_region
            %s317 = ssub.s32 4, 1
            loop: start=0, step=1, limit=1
            $region77: #{mlp_forward.1} parent=75 // loop_pre_header
              _
            $region78: #{mlp_forward.1} parent=75 // loop_header
              %s319 = sphi 0, %s323
              %p320 = scmp.ge.s32.totalorder %s319, 1
              %s324 = sphi [#allocation8], [#allocation8]
              %s325 = sphi %s9, %s9
            $region79: #{mlp_forward.1} parent=75 // loop_header_branch
              %322 = sbr.rel (%p320) target = $region83
            $region80: #{mlp_forward.1} parent=75 // loop_body
              %v326 = vld [vmem:[%s324] sm:%s317]
              %327 = vst [vmem:[%s325] sm:%s317] %v326
            $region81: #{mlp_forward.1} parent=75 // loop_footer
              %s323 = sadd.s32 1, %s319
            $region82: #{mlp_forward.1} parent=75 // loop_footer_branch
              %318 = sbr.rel target = $region78
            $region83: #{mlp_forward.1} parent=75 // loop_exit
              _
          $region76: #{mlp_forward.1} parent=60 // pred_fallthru
            _
        $region61: #{mlp_forward.1} parent=56 // pred_fallthru
          _
        // Predicated region
        $region62: #{mlp_forward.1} parent=56 // pred_check
          _
        $region63: #{mlp_forward.1} parent=56 // pred_check_branch
          %301 = sbr.rel (0) target = $region65
        $region64: #{mlp_forward.1} parent=56 // pred_region
          %s303 = ssub.s32 4, 1
          loop: start=0, step=1, limit=1
          $region66: #{mlp_forward.1} parent=64 // loop_pre_header
            _
          $region67: #{mlp_forward.1} parent=64 // loop_header
            %s305 = sphi 0, %s309
            %p306 = scmp.ge.s32.totalorder %s305, 1
            %s310 = sphi [#allocation8], [#allocation8]
            %s311 = sphi %s9, %s9
          $region68: #{mlp_forward.1} parent=64 // loop_header_branch
            %308 = sbr.rel (%p306) target = $region72
          $region69: #{mlp_forward.1} parent=64 // loop_body
            %v312 = vld [vmem:[%s310] sm:%s303]
            %313 = vst [vmem:[%s311] sm:%s303] %v312
          $region70: #{mlp_forward.1} parent=64 // loop_footer
            %s309 = sadd.s32 1, %s305
          $region71: #{mlp_forward.1} parent=64 // loop_footer_branch
            %304 = sbr.rel target = $region67
          $region72: #{mlp_forward.1} parent=64 // loop_exit
            _
        $region65: #{mlp_forward.1} parent=56 // pred_fallthru
          _
      $region57: #{mlp_forward.1} parent=52 // pred_fallthru
        _
      %328 = vnop
    $region53: #{mlp_forward.1} parent=1 // pred_fallthru
      _
    // Predicated region
    $region84: #{mlp_forward.1} parent=1 // pred_check
      _
    $region85: #{mlp_forward.1} parent=1 // pred_check_branch
      %330 = sbr.rel (0) target = $region87
    $region86: #{mlp_forward.1} parent=1 // pred_region
      _
    $region87: #{mlp_forward.1} parent=1 // pred_fallthru
      _
    %331 = vsyncpa [#allocation4], 1
    %332 = vsyncpa [#allocation6], 1

</llo_original>
